<compile_context>
chip_gen: v7x
topology: tpu7x:2x2x1
jax: 0.10.0
libtpu: 0.0.40
codegen_flags: <defaults>
</compile_context>

<pallas_src>
import jax
import jax.numpy as jnp
from jax.experimental import pallas as pl
from jax.experimental.pallas import tpu as pltpu


def _round_up(x, m):
    return (x + m - 1) // m * m


def _weighted_proj_kernel(emb_ref, w_ref, wmat_ref, bias_ref, out_ref):
    # Per-row scale in f32 (VPU), cast only the MXU operands to the matmul dtype.
    x = emb_ref[...].astype(jnp.float32) * w_ref[...]              # (tm, in_dim) f32
    y = jnp.dot(x.astype(wmat_ref.dtype), wmat_ref[...],
                preferred_element_type=jnp.float32)                # (tm, tn) f32 accumulate
    out_ref[...] = (y + bias_ref[...]).astype(out_ref.dtype)


def weighted_projector_forward(tensors, params, *, tm=256, tn=512,
                               matmul_dtype=jnp.bfloat16):
    """Pallas implementation of WeightedProjector.forward.

    tensors: dict with 'token_ids' (B, S) int32 and 'token_embeddings' (B, S, in_dim) f32
    params:  dict with 'vocab_weights' (n_vocab,), 'proj_w' (in_dim, out_dim), 'proj_b' (out_dim,)
    Returns the tensors dict updated with 'x' of shape (B, S, out_dim).
    """
    token_ids = tensors["token_ids"]
    emb = tensors["token_embeddings"]
    B, S, in_dim = emb.shape
    out_dim = params["proj_b"].shape[-1]
    M = B * S

    # Lane-dense output tiles: pad out_dim to a multiple of 128.
    out_pad = _round_up(out_dim, 128)
    tn = _round_up(min(tn, out_pad), 128)
    # Row tile: at least 128 MXU rows; shrink only if the whole padded M fits one tile.
    tm = max(128, tm)
    tm = min(tm, _round_up(M, 128))
    M_pad = _round_up(M, tm)
    grid = (out_pad // tn, M_pad // tm)   # (n, m): m fastest -> weight tile reused

    # Wrapper glue: gather per-token scalar weight + exact (erf) GELU on B*S scalars.
    # (Negligible work; the in_dim-wide scale and the matmul stay fused in the kernel.)
    w_gathered = jax.nn.gelu(
        params["vocab_weights"][token_ids].astype(jnp.float32),
        approximate=False,
    ).reshape(M, 1)
    emb_flat = emb.reshape(M, in_dim)
    if M_pad != M:
        emb_flat = jnp.pad(emb_flat, ((0, M_pad - M), (0, 0)))
        w_gathered = jnp.pad(w_gathered, ((0, M_pad - M), (0, 0)))

    proj_w = params["proj_w"].astype(matmul_dtype)
    bias = params["proj_b"].astype(jnp.float32)
    if out_pad != out_dim:
        proj_w = jnp.pad(proj_w, ((0, 0), (0, out_pad - out_dim)))
        bias = jnp.pad(bias, ((0, out_pad - out_dim),))
    bias = bias.reshape(1, out_pad)

    # VMEM budget: double-buffered emb/w/out/bias tiles + double-buffered weight tile.
    vmem_bytes = (2 * tm * in_dim * emb_flat.dtype.itemsize
                  + 2 * tm * 128 * 4                       # (tm,1) scale, lane-padded
                  + 2 * in_dim * tn * proj_w.dtype.itemsize
                  + 2 * 1 * tn * 4
                  + 2 * tm * tn * emb.dtype.itemsize)
    vmem_limit = max(16 << 20, min(int(vmem_bytes) + (8 << 20), 64 << 20))

    out_flat = pl.pallas_call(
        _weighted_proj_kernel,
        out_shape=jax.ShapeDtypeStruct((M_pad, out_pad), emb.dtype),
        grid_spec=pltpu.PrefetchScalarGridSpec(
            num_scalar_prefetch=0,
            grid=grid,
            in_specs=[
                pl.BlockSpec((tm, in_dim), lambda n, m: (m, 0)),   # embedding row tile
                pl.BlockSpec((tm, 1), lambda n, m: (m, 0)),        # per-token gelu weight
                pl.BlockSpec((in_dim, tn), lambda n, m: (0, n)),   # projection column tile
                pl.BlockSpec((1, tn), lambda n, m: (0, n)),        # bias column tile
            ],
            out_specs=pl.BlockSpec((tm, tn), lambda n, m: (m, n)),
        ),
        compiler_params=pltpu.CompilerParams(
            dimension_semantics=("parallel", "parallel"),
            vmem_limit_bytes=vmem_limit,
        ),
    )(emb_flat, w_gathered, proj_w, bias)

    tensors = dict(tensors)
    tensors["x"] = out_flat[:M, :out_dim].reshape(B, S, out_dim)
    return tensors


def init_params(key, in_dim, out_dim, n_vocab):
    k_w, k_b = jax.random.split(key)
    # nn.Linear default init is uniform(-1/sqrt(in_dim), 1/sqrt(in_dim)).
    bound = 1.0 / jnp.sqrt(in_dim)
    proj_w = jax.random.uniform(k_w, (in_dim, out_dim), jnp.float32, -bound, bound)
    proj_b = jax.random.uniform(k_b, (out_dim,), jnp.float32, -bound, bound)
    # self.weights = ones(n_vocab), with "stopword" ids set to 0.1.
    # TODO(synk): real stopword ids come from NLTK + the tokenizer vocab; use a fixed
    #             synthetic id set here since no tokenizer/data is available in-script.
    vocab_weights = jnp.ones((n_vocab,), jnp.float32)
    stopword_ids = jnp.array([1, 3, 5, 7, 11], dtype=jnp.int32)
    vocab_weights = vocab_weights.at[stopword_ids].set(0.1)
    return {"vocab_weights": vocab_weights, "proj_w": proj_w, "proj_b": proj_b}


if __name__ == "__main__":
    B, S, in_dim, out_dim, n_vocab = 2, 8, 32, 16, 100

    key = jax.random.PRNGKey(0)
    k_ids, k_emb, k_params = jax.random.split(key, 3)

    token_ids = jax.random.randint(k_ids, (B, S), 0, n_vocab, dtype=jnp.int32)
    token_embeddings = jax.random.normal(k_emb, (B, S, in_dim), jnp.float32)
    params = init_params(k_params, in_dim, out_dim, n_vocab)

    tensors = {"token_ids": token_ids, "token_embeddings": token_embeddings}
    out = weighted_projector_forward(tensors, params)
    x = jax.block_until_ready(out["x"])

    # Pure-JAX references.
    w_ref = jax.nn.gelu(params["vocab_weights"][token_ids], approximate=False)
    x_scaled = token_embeddings * w_ref[..., None]
    # Exact f32 reference (loose tolerance: kernel uses bf16 MXU operands, f32 accumulate).
    ref_f32 = jnp.einsum("bsd,do->bso", x_scaled, params["proj_w"]) + params["proj_b"]
    assert jnp.allclose(x, ref_f32, atol=5e-2, rtol=5e-2), "mismatch vs f32 reference"
    # Precision-matched reference (operands rounded through bf16, f32 accumulate).
    ref_bf16 = jnp.einsum(
        "bsd,do->bso",
        x_scaled.astype(jnp.bfloat16).astype(jnp.float32),
        params["proj_w"].astype(jnp.bfloat16).astype(jnp.float32),
    ) + params["proj_b"]
    assert jnp.allclose(x, ref_bf16, atol=1e-3, rtol=1e-3), "mismatch vs bf16-matched reference"

    print("KERNEL_OK")
</pallas_src>

<mosaic_0001>
module attributes {stable_mosaic.version = 11 : i64} {
  func.func @_weighted_proj_kernel(%arg0: i32, %arg1: i32, %arg2: memref<128x32xf32, #tpu.memory_space<vmem>>, %arg3: memref<128x1xf32, #tpu.memory_space<vmem>>, %arg4: memref<32x128xbf16, #tpu.memory_space<vmem>>, %arg5: memref<1x128xf32, #tpu.memory_space<vmem>>, %arg6: memref<128x128xf32, #tpu.memory_space<vmem>>) attributes {dimension_semantics = [#tpu.dimension_semantics<parallel>, #tpu.dimension_semantics<parallel>], iteration_bounds = array<i64: 1, 1>, scalar_prefetch = 0 : i64, scratch_operands = 0 : i64, tpu.core_type = #tpu.core_type<tc>, window_params = [{transform_indices = @transform_0, window_bounds = array<i64: 128, 32>}, {transform_indices = @transform_1, window_bounds = array<i64: 128, 1>}, {transform_indices = @transform_2, window_bounds = array<i64: 32, 128>}, {transform_indices = @transform_3, window_bounds = array<i64: 1, 128>}, {transform_indices = @transform_4, window_bounds = array<i64: 128, 128>}]} {
    %c0 = arith.constant 0 : index
    %c0_0 = arith.constant 0 : index
    %0 = vector.load %arg2[%c0, %c0_0] : memref<128x32xf32, #tpu.memory_space<vmem>>, vector<128x32xf32>
    %c0_1 = arith.constant 0 : index
    %c0_2 = arith.constant 0 : index
    %1 = vector.load %arg3[%c0_1, %c0_2] : memref<128x1xf32, #tpu.memory_space<vmem>>, vector<128x1xf32>
    %2 = vector.broadcast %1 : vector<128x1xf32> to vector<128x32xf32>
    %3 = arith.mulf %0, %2 : vector<128x32xf32>
    %4 = arith.truncf %3 : vector<128x32xf32> to vector<128x32xbf16>
    %c0_3 = arith.constant 0 : index
    %c0_4 = arith.constant 0 : index
    %5 = vector.load %arg4[%c0_3, %c0_4] : memref<32x128xbf16, #tpu.memory_space<vmem>>, vector<32x128xbf16>
    %cst = arith.constant dense<0.000000e+00> : vector<128x128xf32>
    %6 = tpu.matmul %4, %5, %cst {dimension_numbers = #tpu.dot_dimension_numbers<[1], [0], [0], [1], [0, 0, 1, 1], [], []>} : vector<128x32xbf16>, vector<32x128xbf16>, vector<128x128xf32> -> vector<128x128xf32>
    %c0_5 = arith.constant 0 : index
    %c0_6 = arith.constant 0 : index
    %7 = vector.load %arg5[%c0_5, %c0_6] : memref<1x128xf32, #tpu.memory_space<vmem>>, vector<1x128xf32>
    %8 = vector.broadcast %7 : vector<1x128xf32> to vector<128x128xf32>
    %9 = arith.addf %6, %8 : vector<128x128xf32>
    %c0_7 = arith.constant 0 : index
    %c0_8 = arith.constant 0 : index
    %10 = vector.load %arg6[%c0_7, %c0_8] : memref<128x128xf32, #tpu.memory_space<vmem>>, vector<128x128xf32>
    tpu.vector_store %arg6[%c0_7, %c0_8], %9 {strides = array<i32>} : memref<128x128xf32, #tpu.memory_space<vmem>>, vector<128x128xf32>,
    return
  }
  func.func @transform_0(%arg0: i32, %arg1: i32) -> (i32, i32) {
    %c0_i32 = arith.constant 0 : i32
    %c0_i32_0 = arith.constant 0 : i32
    return %arg1, %c0_i32 : i32, i32
  }
  func.func @transform_1(%arg0: i32, %arg1: i32) -> (i32, i32) {
    %c0_i32 = arith.constant 0 : i32
    %c0_i32_0 = arith.constant 0 : i32
    return %arg1, %c0_i32 : i32, i32
  }
  func.func @transform_2(%arg0: i32, %arg1: i32) -> (i32, i32) {
    %c0_i32 = arith.constant 0 : i32
    %c0_i32_0 = arith.constant 0 : i32
    return %c0_i32, %arg0 : i32, i32
  }
  func.func @transform_3(%arg0: i32, %arg1: i32) -> (i32, i32) {
    %c0_i32 = arith.constant 0 : i32
    %c0_i32_0 = arith.constant 0 : i32
    return %c0_i32, %arg0 : i32, i32
  }
  func.func @transform_4(%arg0: i32, %arg1: i32) -> (i32, i32) {
    %c0_i32 = arith.constant 0 : i32
    return %arg1, %arg0 : i32, i32
  }
}

</mosaic_0001>

<llo_original>
// kernel: tpu_custom_call.1
$region0: #{tpu_custom_call.1}
  #allocation0 [shape = 'u32[]', space=smem, size = 0x4, offset = 0x4, fixed_abs, tag = 'smem constant byte address 0x4 - core index']
  #allocation1 [shape = 'u32[144,128]{1,0:T(1,128)}', space=vmem, size = 0x12000, scoped, tag = 'internal scratch']
  %s0 = inlined_call_operand.vmem [shape: f32[128,32], index: 0, kind: input, shape index: {}]
  %s1 = inlined_call_operand.vmem [shape: f32[128,1], index: 1, kind: input, shape index: {}]
  %s2 = inlined_call_operand.vmem [shape: bf16[32,128], index: 2, kind: input, shape index: {}]
  %s3 = inlined_call_operand.vmem [shape: f32[1,128], index: 3, kind: input, shape index: {}]
  %s4 = inlined_call_operand.hbm [shape: f32[128,128], index: 4, kind: output, shape index: {}]
  %s5 = sld [smem:[#allocation0]]
  $region26: #{tpu_custom_call.1} parent=0
    _
  %s7 = ssub.s32 1, %s5
  %s8 = scalar_select 0, %s7, %s5
  $region1: #{tpu_custom_call.1} parent=0
    #allocation2 [shape = 'u8[65536]{0}', space=vmem, size = 0x10000, scoped, tag = 'output window, operand 0, single buffered']
    #allocation3 [shape = 's32[1]{0}', space=sflag, size = 0x4, scoped, tag = 'scoped memory for tpu_custom_call.1']
    %9 = vsyncpa [#allocation3], 0
    // Predicated region
    $region2: #{tpu_custom_call.1} parent=1 // pred_check
      _
    $region3: #{tpu_custom_call.1} parent=1 // pred_check_branch
      %11 = sbr.rel (0) target = $region5
    $region4: #{tpu_custom_call.1} parent=1 // pred_region
      _
    $region5: #{tpu_custom_call.1} parent=1 // pred_fallthru
      _
    // Predicated region
    $region6: #{tpu_custom_call.1} parent=1 // pred_check
      _
    $region7: #{tpu_custom_call.1} parent=1 // pred_check_branch
      %13 = sbr.rel (0) target = $region9
    $region8: #{tpu_custom_call.1} parent=1 // pred_region
      _
    $region9: #{tpu_custom_call.1} parent=1 // pred_fallthru
      _
    // Predicated region
    $region10: #{tpu_custom_call.1} parent=1 // pred_check
      _
    $region11: #{tpu_custom_call.1} parent=1 // pred_check_branch
      %15 = sbr.rel (0) target = $region13
    $region12: #{tpu_custom_call.1} parent=1 // pred_region
      _
    $region13: #{tpu_custom_call.1} parent=1 // pred_fallthru
      _
    // Predicated region
    $region14: #{tpu_custom_call.1} parent=1 // pred_check
      _
    $region15: #{tpu_custom_call.1} parent=1 // pred_check_branch
      %17 = sbr.rel (0) target = $region17
    $region16: #{tpu_custom_call.1} parent=1 // pred_region
      _
    $region17: #{tpu_custom_call.1} parent=1 // pred_fallthru
      _
    %v19 = vld [vmem:[%s0] sm:$0xff]
    %v20 = vld [vmem:[%s0 + $0x8] sm:$0xff]
    %v21 = vld [vmem:[%s0 + $0x10] sm:$0xff]
    %v22 = vld [vmem:[%s0 + $0x18] sm:$0xff]
    %v23 = vld [vmem:[%s0 + $0x20] sm:$0xff]
    %v24 = vld [vmem:[%s0 + $0x28] sm:$0xff]
    %v25 = vld [vmem:[%s0 + $0x30] sm:$0xff]
    %v26 = vld [vmem:[%s0 + $0x38] sm:$0xff]
    %v27 = vld [vmem:[%s0 + $0x40] sm:$0xff]
    %v28 = vld [vmem:[%s0 + $0x48] sm:$0xff]
    %v29 = vld [vmem:[%s0 + $0x50] sm:$0xff]
    %v30 = vld [vmem:[%s0 + $0x58] sm:$0xff]
    %v31 = vld [vmem:[%s0 + $0x60] sm:$0xff]
    %v32 = vld [vmem:[%s0 + $0x68] sm:$0xff]
    %v33 = vld [vmem:[%s0 + $0x70] sm:$0xff]
    %v34 = vld [vmem:[%s0 + $0x78] sm:$0xff]
    %v35 = vld [vmem:[%s1] sm:$0xff]
    %v36 = vld [vmem:[%s1 + $0x8] sm:$0xff]
    %v37 = vld [vmem:[%s1 + $0x10] sm:$0xff]
    %v38 = vld [vmem:[%s1 + $0x18] sm:$0xff]
    %v39 = vld [vmem:[%s1 + $0x20] sm:$0xff]
    %v40 = vld [vmem:[%s1 + $0x28] sm:$0xff]
    %v41 = vld [vmem:[%s1 + $0x30] sm:$0xff]
    %v42 = vld [vmem:[%s1 + $0x38] sm:$0xff]
    %v43 = vld [vmem:[%s1 + $0x40] sm:$0xff]
    %v44 = vld [vmem:[%s1 + $0x48] sm:$0xff]
    %v45 = vld [vmem:[%s1 + $0x50] sm:$0xff]
    %v46 = vld [vmem:[%s1 + $0x58] sm:$0xff]
    %v47 = vld [vmem:[%s1 + $0x60] sm:$0xff]
    %v48 = vld [vmem:[%s1 + $0x68] sm:$0xff]
    %v49 = vld [vmem:[%s1 + $0x70] sm:$0xff]
    %v50 = vld [vmem:[%s1 + $0x78] sm:$0xff]
    %52 = vset.pattern.permute.xlu0 0
    %53 = vperm.xlu0 %52, %v35
    %v54 = vpop.permute.xlu0 %53
    %57 = vset.pattern.permute.xlu0 0
    %58 = vperm.xlu0 %57, %v36
    %v59 = vpop.permute.xlu0 %58
    %62 = vset.pattern.permute.xlu0 0
    %63 = vperm.xlu0 %62, %v37
    %v64 = vpop.permute.xlu0 %63
    %67 = vset.pattern.permute.xlu0 0
    %68 = vperm.xlu0 %67, %v38
    %v69 = vpop.permute.xlu0 %68
    %72 = vset.pattern.permute.xlu0 0
    %73 = vperm.xlu0 %72, %v39
    %v74 = vpop.permute.xlu0 %73
    %77 = vset.pattern.permute.xlu0 0
    %78 = vperm.xlu0 %77, %v40
    %v79 = vpop.permute.xlu0 %78
    %82 = vset.pattern.permute.xlu0 0
    %83 = vperm.xlu0 %82, %v41
    %v84 = vpop.permute.xlu0 %83
    %87 = vset.pattern.permute.xlu0 0
    %88 = vperm.xlu0 %87, %v42
    %v89 = vpop.permute.xlu0 %88
    %92 = vset.pattern.permute.xlu0 0
    %93 = vperm.xlu0 %92, %v43
    %v94 = vpop.permute.xlu0 %93
    %97 = vset.pattern.permute.xlu0 0
    %98 = vperm.xlu0 %97, %v44
    %v99 = vpop.permute.xlu0 %98
    %102 = vset.pattern.permute.xlu0 0
    %103 = vperm.xlu0 %102, %v45
    %v104 = vpop.permute.xlu0 %103
    %107 = vset.pattern.permute.xlu0 0
    %108 = vperm.xlu0 %107, %v46
    %v109 = vpop.permute.xlu0 %108
    %112 = vset.pattern.permute.xlu0 0
    %113 = vperm.xlu0 %112, %v47
    %v114 = vpop.permute.xlu0 %113
    %117 = vset.pattern.permute.xlu0 0
    %118 = vperm.xlu0 %117, %v48
    %v119 = vpop.permute.xlu0 %118
    %122 = vset.pattern.permute.xlu0 0
    %123 = vperm.xlu0 %122, %v49
    %v124 = vpop.permute.xlu0 %123
    %127 = vset.pattern.permute.xlu0 0
    %128 = vperm.xlu0 %127, %v50
    %v129 = vpop.permute.xlu0 %128
    %v131 = vmul.f32 %v19, %v54
    %v132 = vmul.f32 %v20, %v59
    %v133 = vmul.f32 %v21, %v64
    %v134 = vmul.f32 %v22, %v69
    %v135 = vmul.f32 %v23, %v74
    %v136 = vmul.f32 %v24, %v79
    %v137 = vmul.f32 %v25, %v84
    %v138 = vmul.f32 %v26, %v89
    %v139 = vmul.f32 %v27, %v94
    %v140 = vmul.f32 %v28, %v99
    %v141 = vmul.f32 %v29, %v104
    %v142 = vmul.f32 %v30, %v109
    %v143 = vmul.f32 %v31, %v114
    %v144 = vmul.f32 %v32, %v119
    %v145 = vmul.f32 %v33, %v124
    %v146 = vmul.f32 %v34, %v129
    %v147 = vpack.c.bf16 %v132, %v131
    %v148 = vpack.c.bf16 %v134, %v133
    %v149 = vpack.c.bf16 %v136, %v135
    %v150 = vpack.c.bf16 %v138, %v137
    %v151 = vpack.c.bf16 %v140, %v139
    %v152 = vpack.c.bf16 %v142, %v141
    %v153 = vpack.c.bf16 %v144, %v143
    %v154 = vpack.c.bf16 %v146, %v145
    %v155 = vld [vmem:[%s2] sm:$0xf]
    %v156 = vld [vmem:[%s2 + $0x4] sm:$0xf]
    %v157 = vld [vmem:[%s2 + $0x8] sm:$0xf]
    %v158 = vld [vmem:[%s2 + $0xc] sm:$0xf]
    %v159 = vld [vmem:[%s3] sm:$0x1]
    %v161 = vlaneseq
    %v162 = vshrl.u32 %v161, 7
    %v163 = vsub.s32 0, %v162
    %v164 = vrot.slane %v159, %v163
    %v170 = vunpack.c.l.b16 %v155
    %v171 = vunpack.c.l.b16 %v156
    %v172 = vunpack.c.l.b16 %v157
    %v173 = vunpack.c.l.b16 %v158
    %v174 = vpack.c.b16 %v171, %v170
    %v175 = vpack.c.b16 %v173, %v172
    %vm178 = vcmask 261120
    %v180 = vsel %vm178, %v147, 0
    %v183 = vsel %vm178, %v148, 0
    %v186 = vsel %vm178, %v149, 0
    %v189 = vsel %vm178, %v150, 0
    %v192 = vsel %vm178, %v151, 0
    %v195 = vsel %vm178, %v152, 0
    %v198 = vsel %vm178, %v153, 0
    %v201 = vsel %vm178, %v154, 0
    %203 = vmatprep.subr.bf16.mxu0 0
    %204 = vmatpush1.bf16.msra.mxu0 %v174
    %205 = vmatprep.subr.bf16.mxu0 0
    %206 = vmatpush1.bf16.msra.mxu0 %v175
    %207 = vmatprep.subr.bf16.mxu0 0
    %208 = vmatpush1.bf16.msra.mxu0 0
    %209 = vmatprep.subr.bf16.mxu0 0
    %210 = vmatpush1.bf16.msra.mxu0 0
    %211 = vmatprep.subr.bf16.mxu0 0
    %212 = vmatpush1.bf16.msra.mxu0 0
    %213 = vmatprep.subr.bf16.mxu0 0
    %214 = vmatpush1.bf16.msra.mxu0 0
    %215 = vmatprep.subr.bf16.mxu0 0
    %216 = vmatpush1.bf16.msra.mxu0 0
    %217 = vmatprep.subr.bf16.mxu0 0
    %218 = vmatpush1.bf16.msra.mxu0 0
    %219 = vmatprep.subr.bf16.mxu0 0
    %220 = vmatpush1.bf16.msra.mxu0 0
    %221 = vmatprep.subr.bf16.mxu0 0
    %222 = vmatpush1.bf16.msra.mxu0 0
    %223 = vmatprep.subr.bf16.mxu0 0
    %224 = vmatpush1.bf16.msra.mxu0 0
    %225 = vmatprep.subr.bf16.mxu0 0
    %226 = vmatpush1.bf16.msra.mxu0 0
    %227 = vmatprep.subr.bf16.mxu0 0
    %228 = vmatpush1.bf16.msra.mxu0 0
    %229 = vmatprep.subr.bf16.mxu0 0
    %230 = vmatpush1.bf16.msra.mxu0 0
    %231 = vmatprep.subr.bf16.mxu0 0
    %232 = vmatpush1.bf16.msra.mxu0 0
    %233 = vmatprep.subr.bf16.mxu0 0
    %234 = vmatpush1.bf16.msra.mxu0 0
    %235 = vmatprep.mubr.bf16.mxu0 0
    %236 = vmatmul.mubr.bf16.gmra.mrb[0].mxu0 %v180
    %v237 = vpop.f32.mrb[0].mxu0
    %v238 = vadd.f32 %v164, %v237
    %v239 = vpop.f32.mrb[0].mxu0
    %v240 = vpop.f32.mrb[0].mxu0
    %v241 = vadd.f32 %v164, %v240
    %v242 = vpop.f32.mrb[0].mxu0
    %243 = vmatprep.mubr.bf16.mxu0 0
    %244 = vmatmul.mubr.bf16.gmra.mrb[0].mxu0 %v183
    %v245 = vpop.f32.mrb[0].mxu0
    %v246 = vadd.f32 %v164, %v245
    %v247 = vpop.f32.mrb[0].mxu0
    %v248 = vpop.f32.mrb[0].mxu0
    %v249 = vadd.f32 %v164, %v248
    %v250 = vpop.f32.mrb[0].mxu0
    %251 = vmatprep.mubr.bf16.mxu0 0
    %252 = vmatmul.mubr.bf16.gmra.mrb[0].mxu0 %v186
    %v253 = vpop.f32.mrb[0].mxu0
    %v254 = vadd.f32 %v164, %v253
    %v255 = vpop.f32.mrb[0].mxu0
    %v256 = vpop.f32.mrb[0].mxu0
    %v257 = vadd.f32 %v164, %v256
    %v258 = vpop.f32.mrb[0].mxu0
    %259 = vmatprep.mubr.bf16.mxu0 0
    %260 = vmatmul.mubr.bf16.gmra.mrb[0].mxu0 %v189
    %v261 = vpop.f32.mrb[0].mxu0
    %v262 = vadd.f32 %v164, %v261
    %v263 = vpop.f32.mrb[0].mxu0
    %v264 = vpop.f32.mrb[0].mxu0
    %v265 = vadd.f32 %v164, %v264
    %v266 = vpop.f32.mrb[0].mxu0
    %267 = vmatprep.mubr.bf16.mxu0 0
    %268 = vmatmul.mubr.bf16.gmra.mrb[0].mxu0 %v192
    %v269 = vpop.f32.mrb[0].mxu0
    %v270 = vadd.f32 %v164, %v269
    %v271 = vpop.f32.mrb[0].mxu0
    %v272 = vpop.f32.mrb[0].mxu0
    %v273 = vadd.f32 %v164, %v272
    %v274 = vpop.f32.mrb[0].mxu0
    %275 = vmatprep.mubr.bf16.mxu0 0
    %276 = vmatmul.mubr.bf16.gmra.mrb[0].mxu0 %v195
    %v277 = vpop.f32.mrb[0].mxu0
    %v278 = vadd.f32 %v164, %v277
    %v279 = vpop.f32.mrb[0].mxu0
    %v280 = vpop.f32.mrb[0].mxu0
    %v281 = vadd.f32 %v164, %v280
    %v282 = vpop.f32.mrb[0].mxu0
    %283 = vmatprep.mubr.bf16.mxu0 0
    %284 = vmatmul.mubr.bf16.gmra.mrb[0].mxu0 %v198
    %v285 = vpop.f32.mrb[0].mxu0
    %v286 = vadd.f32 %v164, %v285
    %v287 = vpop.f32.mrb[0].mxu0
    %v288 = vpop.f32.mrb[0].mxu0
    %v289 = vadd.f32 %v164, %v288
    %v290 = vpop.f32.mrb[0].mxu0
    %291 = vmatprep.mubr.bf16.mxu0 0
    %292 = vmatmul.mubr.bf16.gmra.mrb[0].mxu0 %v201
    %v293 = vpop.f32.mrb[0].mxu0
    %v294 = vadd.f32 %v164, %v293
    %v295 = vpop.f32.mrb[0].mxu0
    %v296 = vpop.f32.mrb[0].mxu0
    %v297 = vadd.f32 %v164, %v296
    %v298 = vpop.f32.mrb[0].mxu0
    %299 = vdwg.mxu0
    %300 = vst [vmem:[#allocation2] sm:$0xff] %v238
    %301 = vst [vmem:[#allocation2 + $0x8] sm:$0xff] %v241
    %302 = vst [vmem:[#allocation2 + $0x10] sm:$0xff] %v246
    %303 = vst [vmem:[#allocation2 + $0x18] sm:$0xff] %v249
    %304 = vst [vmem:[#allocation2 + $0x20] sm:$0xff] %v254
    %305 = vst [vmem:[#allocation2 + $0x28] sm:$0xff] %v257
    %306 = vst [vmem:[#allocation2 + $0x30] sm:$0xff] %v262
    %307 = vst [vmem:[#allocation2 + $0x38] sm:$0xff] %v265
    %308 = vst [vmem:[#allocation2 + $0x40] sm:$0xff] %v270
    %309 = vst [vmem:[#allocation2 + $0x48] sm:$0xff] %v273
    %310 = vst [vmem:[#allocation2 + $0x50] sm:$0xff] %v278
    %311 = vst [vmem:[#allocation2 + $0x58] sm:$0xff] %v281
    %312 = vst [vmem:[#allocation2 + $0x60] sm:$0xff] %v286
    %313 = vst [vmem:[#allocation2 + $0x68] sm:$0xff] %v289
    %314 = vst [vmem:[#allocation2 + $0x70] sm:$0xff] %v294
    %315 = vst [vmem:[#allocation2 + $0x78] sm:$0xff] %v297
    // Predicated region
    $region18: #{tpu_custom_call.1} parent=1 // pred_check
      _
    $region19: #{tpu_custom_call.1} parent=1 // pred_check_branch
      %317 = sbr.rel (0) target = $region21
    $region20: #{tpu_custom_call.1} parent=1 // pred_region
      %s319 = ssub.s32 2048, 2048
      %320 = vsyncadd [#allocation3], %s319
      %s321 = sshll.u32 [#allocation2], 4
      %s322 = int_to_ptr.vmem [resolvable:$true] %s321
      %327 = dma.vmem_to_hbm [thread:$0]  %s322, 2048, %s4, [#allocation3], 128, 128, 8
    $region21: #{tpu_custom_call.1} parent=1 // pred_fallthru
      _
    // Predicated region
    $region22: #{tpu_custom_call.1} parent=1 // pred_check
      _
    $region23: #{tpu_custom_call.1} parent=1 // pred_check_branch
      %329 = sbr.rel (0) target = $region25
    $region24: #{tpu_custom_call.1} parent=1 // pred_region
      %330 = dma.done [#allocation3], 2048
    $region25: #{tpu_custom_call.1} parent=1 // pred_fallthru
      _
    %331 = vsyncpa [#allocation3], 1

</llo_original>
